<compile_context>
chip_gen: v5e
topology: v5e:2x2
jax: 0.10.0
libtpu: 0.0.40
codegen_flags: <defaults>
</compile_context>

<pallas_src>
import functools

import jax
import jax.numpy as jnp
from jax import lax
from jax.experimental import pallas as pl
from jax.experimental.pallas import tpu as pltpu


def _round_up(a, b):
    return (a + b - 1) // b * b


# ---------------------------------------------------------------------------
# Kernel 1: fused projection   proj = x @ [Wq*s | Wk | Wv | Ws(pad)] + b
# emitted as bf16 q, k, v and f32 skip row blocks.
# ---------------------------------------------------------------------------
def _proj_kernel(x_ref, w_ref, b_ref, q_ref, k_ref, v_ref, skip_ref, *, hc):
    p = jnp.dot(x_ref[...], w_ref[...], preferred_element_type=jnp.float32)
    p = p + b_ref[...]
    q_ref[...] = p[:, 0 * hc:1 * hc].astype(q_ref.dtype)
    k_ref[...] = p[:, 1 * hc:2 * hc].astype(k_ref.dtype)
    v_ref[...] = p[:, 2 * hc:3 * hc].astype(v_ref.dtype)
    skip_ref[...] = p[:, 3 * hc:].astype(skip_ref.dtype)


def _project(x, w, b, *, hc, skip_pad, tr, cparams):
    n, f = x.shape
    pw = w.shape[1]
    row_spec = lambda width: pl.BlockSpec((tr, width), lambda i: (i, 0))
    return pl.pallas_call(
        functools.partial(_proj_kernel, hc=hc),
        out_shape=(
            jax.ShapeDtypeStruct((n, hc), jnp.bfloat16),
            jax.ShapeDtypeStruct((n, hc), jnp.bfloat16),
            jax.ShapeDtypeStruct((n, hc), jnp.bfloat16),
            jax.ShapeDtypeStruct((n, skip_pad), jnp.float32),
        ),
        grid_spec=pltpu.PrefetchScalarGridSpec(
            num_scalar_prefetch=0,
            grid=(n // tr,),
            in_specs=[
                pl.BlockSpec((tr, f), lambda i: (i, 0)),
                pl.BlockSpec((f, pw), lambda i: (0, 0)),
                pl.BlockSpec((1, pw), lambda i: (0, 0)),
            ],
            out_specs=(row_spec(hc), row_spec(hc), row_spec(hc),
                       row_spec(skip_pad)),
        ),
        compiler_params=cparams,
    )(x, w, b)


# ---------------------------------------------------------------------------
# Kernel 2: masked multi-head attention over the dense adjacency,
# flash-style online softmax across kv blocks.
# ---------------------------------------------------------------------------
def _attn_kernel(q_ref, k_ref, v_ref, skip_ref, adj_ref, o_ref,
                 m_ref, l_ref, acc_ref, deg_ref,
                 *, heads, out_ch, concat, relu, exp_dtype):
    ki = pl.program_id(1)
    nk = pl.num_programs(1)

    @pl.when(ki == 0)
    def _():
        m_ref[...] = jnp.full(m_ref.shape, -jnp.inf, m_ref.dtype)
        l_ref[...] = jnp.zeros(l_ref.shape, l_ref.dtype)
        acc_ref[...] = jnp.zeros(acc_ref.shape, acc_ref.dtype)
        deg_ref[...] = jnp.zeros(deg_ref.shape, deg_ref.dtype)

    mask = adj_ref[...] > 0                                   # (TQ, TK) bool
    deg_ref[...] += jnp.sum(mask.astype(jnp.float32), axis=-1, keepdims=True)
    neg = jnp.float32(-1e30)

    # TODO(synk): batch the heads into a single 3-D dot_general to avoid the
    # 8-lane per-head slices once Mosaic relayout cost shows in profiles.
    for h in range(heads):                                    # static unroll
        sl = slice(h * out_ch, (h + 1) * out_ch)
        hsl = slice(h, h + 1)
        qh = q_ref[:, sl]                                     # bf16 (TQ, C)
        kh = k_ref[:, sl]
        vh = v_ref[:, sl]
        s = lax.dot_general(qh, kh, (((1,), (1,)), ((), ())),
                            preferred_element_type=jnp.float32)
        s = jnp.where(mask, s, neg)                           # per-tile mask
        m_prev = m_ref[:, hsl]
        m_new = jnp.maximum(m_prev, jnp.max(s, axis=-1, keepdims=True))
        alpha = jnp.exp(m_prev - m_new)                       # (TQ, 1) f32
        p = jnp.exp((s - m_new).astype(exp_dtype))            # bf16 EUP on v6e/v7x
        l_ref[:, hsl] = alpha * l_ref[:, hsl] + jnp.sum(
            p, axis=-1, keepdims=True, dtype=jnp.float32)
        acc_ref[:, sl] = alpha * acc_ref[:, sl] + jnp.dot(
            p.astype(jnp.bfloat16), vh, preferred_element_type=jnp.float32)
        m_ref[:, hsl] = m_new

    @pl.when(ki == nk - 1)
    def _():
        # Deferred normalization + PyG zero-aggregation for isolated nodes.
        has_edge = jnp.where(deg_ref[...] > 0.0, 1.0, 0.0)    # (TQ, 1)
        inv_l = pl.reciprocal(jnp.maximum(l_ref[...], 1e-30), approx=True)
        outs = []
        for h in range(heads):
            sl = slice(h * out_ch, (h + 1) * out_ch)
            outs.append(acc_ref[:, sl] * (inv_l[:, h:h + 1] * has_edge))
        if concat:
            out = jnp.concatenate(outs, axis=-1)
            skip = skip_ref[...]
        else:
            out = outs[0]
            for t in outs[1:]:
                out = out + t
            out = out * jnp.float32(1.0 / heads)
            skip = skip_ref[:, :out_ch]
        out = out + skip
        if relu:
            out = jnp.maximum(out, 0.0)
        o_ref[...] = out.astype(o_ref.dtype)


def _attention(q, k, v, skip, adj, *, heads, out_ch, concat, relu,
               tq, tk, out_dtype, exp_dtype, cparams):
    n = q.shape[0]
    hc = heads * out_ch
    out_dim = hc if concat else out_ch
    skip_w = skip.shape[1]
    kernel = functools.partial(_attn_kernel, heads=heads, out_ch=out_ch,
                               concat=concat, relu=relu, exp_dtype=exp_dtype)
    return pl.pallas_call(
        kernel,
        out_shape=jax.ShapeDtypeStruct((n, out_dim), out_dtype),
        grid_spec=pltpu.PrefetchScalarGridSpec(
            num_scalar_prefetch=0,
            grid=(n // tq, n // tk),
            in_specs=[
                pl.BlockSpec((tq, hc), lambda qi, ki: (qi, 0)),
                pl.BlockSpec((tk, hc), lambda qi, ki: (ki, 0)),
                pl.BlockSpec((tk, hc), lambda qi, ki: (ki, 0)),
                pl.BlockSpec((tq, skip_w), lambda qi, ki: (qi, 0)),
                pl.BlockSpec((tq, tk), lambda qi, ki: (qi, ki)),
            ],
            out_specs=pl.BlockSpec((tq, out_dim), lambda qi, ki: (qi, 0)),
            scratch_shapes=[
                pltpu.VMEM((tq, heads), jnp.float32),   # running max per head
                pltpu.VMEM((tq, heads), jnp.float32),   # running denom per head
                pltpu.VMEM((tq, hc), jnp.float32),      # un-normalized acc
                pltpu.VMEM((tq, 1), jnp.float32),       # in-degree accumulator
            ],
        ),
        compiler_params=cparams,
    )(q, k, v, skip, adj)


# ---------------------------------------------------------------------------
# Parameter prep / wrapper
# ---------------------------------------------------------------------------
def _fuse_conv_params(p, out_ch):
    """[Wq/sqrt(C) | Wk | Wv | Ws] fused and zero-padded to a 128-lane width."""
    scale = jnp.float32(1.0 / (out_ch ** 0.5))
    w = jnp.concatenate([p["wq"] * scale, p["wk"], p["wv"], p["ws"]], axis=1)
    b = jnp.concatenate([p["bq"] * scale, p["bk"], p["bv"], p["bs"]], axis=1)
    hc3 = 3 * p["wq"].shape[1]
    total = w.shape[1]
    target = _round_up(total, 128)
    if target > total:
        w = jnp.pad(w, ((0, 0), (0, target - total)))
        b = jnp.pad(b, ((0, 0), (0, target - total)))
    skip_pad = target - hc3
    return w.astype(jnp.bfloat16), b.astype(jnp.float32), skip_pad


def _device_kind():
    try:
        return jax.devices()[0].device_kind.lower()
    except Exception:
        return ""


def graph_transformer(x, edge_index, params, *, heads, out_ch):
    n, in_ch = x.shape
    kind = _device_kind()
    # Per-generation tile / VMEM budget (v7x: 64 MiB VMEM; v6e: 128 MiB).
    if "v7" in kind:
        pref_tile, vmem_limit = 256, 48 * 1024 * 1024
    elif "v6" in kind:
        pref_tile, vmem_limit = 512, 96 * 1024 * 1024
    else:  # v5e / unknown
        pref_tile, vmem_limit = 256, 64 * 1024 * 1024
    exp_dtype = jnp.bfloat16 if ("v6" in kind or "v7" in kind) else jnp.float32

    tile = min(pref_tile, _round_up(n, 128))
    n_pad = _round_up(n, tile)

    # Dense int8 adjacency: adj[target, source] = 1 (messages flow src -> tgt).
    adj = jnp.zeros((n_pad, n_pad), jnp.int8)
    adj = adj.at[edge_index[1], edge_index[0]].set(1)

    x_pad = jnp.zeros((n_pad, in_ch), jnp.bfloat16).at[:n].set(
        x.astype(jnp.bfloat16))

    attn_cp = pltpu.CompilerParams(
        dimension_semantics=("parallel", "arbitrary"),
        vmem_limit_bytes=vmem_limit)
    proj_cp = pltpu.CompilerParams(
        dimension_semantics=("parallel",),
        vmem_limit_bytes=vmem_limit)

    hc = heads * out_ch

    # ---- conv1 (concat=True) + ReLU ----
    w1, b1, skip_pad1 = _fuse_conv_params(params["conv1"], out_ch)
    q1, k1, v1, s1 = _project(x_pad, w1, b1, hc=hc, skip_pad=skip_pad1,
                              tr=tile, cparams=proj_cp)
    h1 = _attention(q1, k1, v1, s1, adj, heads=heads, out_ch=out_ch,
                    concat=True, relu=True, tq=tile, tk=tile,
                    out_dtype=jnp.bfloat16, exp_dtype=exp_dtype,
                    cparams=attn_cp)

    # ---- conv2 (concat=False) ----
    w2, b2, skip_pad2 = _fuse_conv_params(params["conv2"], out_ch)
    q2, k2, v2, s2 = _project(h1, w2, b2, hc=hc, skip_pad=skip_pad2,
                              tr=tile, cparams=proj_cp)
    out = _attention(q2, k2, v2, s2, adj, heads=heads, out_ch=out_ch,
                     concat=False, relu=False, tq=tile, tk=tile,
                     out_dtype=jnp.float32, exp_dtype=exp_dtype,
                     cparams=attn_cp)
    return out[:n]


# ---------------------------------------------------------------------------
# Init (mirrors torch.nn.Linear defaults used by PyG TransformerConv)
# ---------------------------------------------------------------------------
def _init_linear(key, fan_in, fan_out):
    kw, kb = jax.random.split(key)
    bound = 1.0 / (fan_in ** 0.5)
    w = jax.random.uniform(kw, (fan_in, fan_out), jnp.float32, -bound, bound)
    b = jax.random.uniform(kb, (1, fan_out), jnp.float32, -bound, bound)
    return w, b


def _init_conv(key, in_ch, out_ch, heads, concat):
    keys = jax.random.split(key, 4)
    wq, bq = _init_linear(keys[0], in_ch, heads * out_ch)
    wk, bk = _init_linear(keys[1], in_ch, heads * out_ch)
    wv, bv = _init_linear(keys[2], in_ch, heads * out_ch)
    skip_dim = heads * out_ch if concat else out_ch
    ws, bs = _init_linear(keys[3], in_ch, skip_dim)
    return dict(wq=wq, bq=bq, wk=wk, bk=bk, wv=wv, bv=bv, ws=ws, bs=bs)


def init_params(key, in_ch, out_ch, heads):
    k1, k2 = jax.random.split(key)
    return {
        "conv1": _init_conv(k1, in_ch, out_ch, heads, concat=True),
        "conv2": _init_conv(k2, out_ch * heads, out_ch, heads, concat=False),
    }


if __name__ == "__main__":
    IC, OC, H, N = 16, 8, 4, 300   # in_channels, out_channels, heads, nodes

    key = jax.random.PRNGKey(0)
    kx, kp = jax.random.split(key)

    # data.x : (N, in_channels)
    x = jax.random.normal(kx, (N, IC), jnp.float32)

    # data.edge_index : (2, E) -- bidirectional ring + self loops
    src, tgt = [], []
    for i in range(N):
        src += [i, i, i]
        tgt += [(i + 1) % N, (i - 1) % N, i]
    edge_index = jnp.array([src, tgt], dtype=jnp.int32)       # (2, 3N)

    params = init_params(kp, IC, OC, H)

    out = graph_transformer(x, edge_index, params, heads=H, out_ch=OC)
    out = jax.block_until_ready(out)

    assert out.shape == (N, OC), out.shape
    assert bool(jnp.all(jnp.isfinite(out)))
    print("KERNEL_OK")
</pallas_src>

<mosaic_0001>
module attributes {stable_mosaic.version = 11 : i64} {
  func.func @_proj_kernel(%arg0: i32, %arg1: memref<256x16xbf16, #tpu.memory_space<vmem>>, %arg2: memref<16x128xbf16, #tpu.memory_space<vmem>>, %arg3: memref<1x128xf32, #tpu.memory_space<vmem>>, %arg4: memref<256x32xbf16, #tpu.memory_space<vmem>>, %arg5: memref<256x32xbf16, #tpu.memory_space<vmem>>, %arg6: memref<256x32xbf16, #tpu.memory_space<vmem>>, %arg7: memref<256x32xf32, #tpu.memory_space<vmem>>) attributes {dimension_semantics = [#tpu.dimension_semantics<parallel>], iteration_bounds = array<i64: 2>, scalar_prefetch = 0 : i64, scratch_operands = 0 : i64, tpu.core_type = #tpu.core_type<tc>, window_params = [{transform_indices = @transform_0, window_bounds = array<i64: 256, 16>}, {pipeline_mode = #tpu.pipeline_mode<synchronous>, transform_indices = @transform_1, window_bounds = array<i64: 16, 128>}, {pipeline_mode = #tpu.pipeline_mode<synchronous>, transform_indices = @transform_2, window_bounds = array<i64: 1, 128>}, {transform_indices = @transform_3, window_bounds = array<i64: 256, 32>}, {transform_indices = @transform_4, window_bounds = array<i64: 256, 32>}, {transform_indices = @transform_5, window_bounds = array<i64: 256, 32>}, {transform_indices = @transform_6, window_bounds = array<i64: 256, 32>}]} {
    %c0 = arith.constant 0 : index
    %c0_0 = arith.constant 0 : index
    %0 = vector.load %arg1[%c0, %c0_0] : memref<256x16xbf16, #tpu.memory_space<vmem>>, vector<256x16xbf16>
    %c0_1 = arith.constant 0 : index
    %c0_2 = arith.constant 0 : index
    %1 = vector.load %arg2[%c0_1, %c0_2] : memref<16x128xbf16, #tpu.memory_space<vmem>>, vector<16x128xbf16>
    %cst = arith.constant dense<0.000000e+00> : vector<256x128xf32>
    %2 = tpu.matmul %0, %1, %cst {dimension_numbers = #tpu.dot_dimension_numbers<[1], [0], [0], [1], [0, 0, 1, 1], [], []>} : vector<256x16xbf16>, vector<16x128xbf16>, vector<256x128xf32> -> vector<256x128xf32>
    %c0_3 = arith.constant 0 : index
    %c0_4 = arith.constant 0 : index
    %3 = vector.load %arg3[%c0_3, %c0_4] : memref<1x128xf32, #tpu.memory_space<vmem>>, vector<1x128xf32>
    %4 = vector.broadcast %3 : vector<1x128xf32> to vector<256x128xf32>
    %5 = arith.addf %2, %4 : vector<256x128xf32>
    %6 = vector.extract_strided_slice %5 {offsets = [0, 0], sizes = [256, 32], strides = [1, 1]} : vector<256x128xf32> to vector<256x32xf32>
    %7 = arith.truncf %6 : vector<256x32xf32> to vector<256x32xbf16>
    %c0_5 = arith.constant 0 : index
    %c0_6 = arith.constant 0 : index
    %8 = vector.load %arg4[%c0_5, %c0_6] : memref<256x32xbf16, #tpu.memory_space<vmem>>, vector<256x32xbf16>
    tpu.vector_store %arg4[%c0_5, %c0_6], %7 {strides = array<i32>} : memref<256x32xbf16, #tpu.memory_space<vmem>>, vector<256x32xbf16>,
    %9 = vector.extract_strided_slice %5 {offsets = [0, 32], sizes = [256, 32], strides = [1, 1]} : vector<256x128xf32> to vector<256x32xf32>
    %10 = arith.truncf %9 : vector<256x32xf32> to vector<256x32xbf16>
    %c0_7 = arith.constant 0 : index
    %c0_8 = arith.constant 0 : index
    %11 = vector.load %arg5[%c0_7, %c0_8] : memref<256x32xbf16, #tpu.memory_space<vmem>>, vector<256x32xbf16>
    tpu.vector_store %arg5[%c0_7, %c0_8], %10 {strides = array<i32>} : memref<256x32xbf16, #tpu.memory_space<vmem>>, vector<256x32xbf16>,
    %12 = vector.extract_strided_slice %5 {offsets = [0, 64], sizes = [256, 32], strides = [1, 1]} : vector<256x128xf32> to vector<256x32xf32>
    %13 = arith.truncf %12 : vector<256x32xf32> to vector<256x32xbf16>
    %c0_9 = arith.constant 0 : index
    %c0_10 = arith.constant 0 : index
    %14 = vector.load %arg6[%c0_9, %c0_10] : memref<256x32xbf16, #tpu.memory_space<vmem>>, vector<256x32xbf16>
    tpu.vector_store %arg6[%c0_9, %c0_10], %13 {strides = array<i32>} : memref<256x32xbf16, #tpu.memory_space<vmem>>, vector<256x32xbf16>,
    %15 = vector.extract_strided_slice %5 {offsets = [0, 96], sizes = [256, 32], strides = [1, 1]} : vector<256x128xf32> to vector<256x32xf32>
    %c0_11 = arith.constant 0 : index
    %c0_12 = arith.constant 0 : index
    %16 = vector.load %arg7[%c0_11, %c0_12] : memref<256x32xf32, #tpu.memory_space<vmem>>, vector<256x32xf32>
    tpu.vector_store %arg7[%c0_11, %c0_12], %15 {strides = array<i32>} : memref<256x32xf32, #tpu.memory_space<vmem>>, vector<256x32xf32>,
    return
  }
  func.func @transform_0(%arg0: i32) -> (i32, i32) {
    %c0_i32 = arith.constant 0 : i32
    %c0_i32_0 = arith.constant 0 : i32
    return %arg0, %c0_i32 : i32, i32
  }
  func.func @transform_1(%arg0: i32) -> (i32, i32) {
    %c0_i32 = arith.constant 0 : i32
    %c0_i32_0 = arith.constant 0 : i32
    %c0_i32_1 = arith.constant 0 : i32
    return %c0_i32, %c0_i32_0 : i32, i32
  }
  func.func @transform_2(%arg0: i32) -> (i32, i32) {
    %c0_i32 = arith.constant 0 : i32
    %c0_i32_0 = arith.constant 0 : i32
    %c0_i32_1 = arith.constant 0 : i32
    return %c0_i32, %c0_i32_0 : i32, i32
  }
  func.func @transform_3(%arg0: i32) -> (i32, i32) {
    %c0_i32 = arith.constant 0 : i32
    %c0_i32_0 = arith.constant 0 : i32
    return %arg0, %c0_i32 : i32, i32
  }
  func.func @transform_4(%arg0: i32) -> (i32, i32) {
    %c0_i32 = arith.constant 0 : i32
    %c0_i32_0 = arith.constant 0 : i32
    return %arg0, %c0_i32 : i32, i32
  }
  func.func @transform_5(%arg0: i32) -> (i32, i32) {
    %c0_i32 = arith.constant 0 : i32
    %c0_i32_0 = arith.constant 0 : i32
    return %arg0, %c0_i32 : i32, i32
  }
  func.func @transform_6(%arg0: i32) -> (i32, i32) {
    %c0_i32 = arith.constant 0 : i32
    %c0_i32_0 = arith.constant 0 : i32
    return %arg0, %c0_i32 : i32, i32
  }
}

</mosaic_0001>

<llo_original>
// kernel: tpu_custom_call.1
$region0: #{tpu_custom_call.1}
  #allocation0 [shape = 'u32[]', space=smem, size = 0x4, offset = 0x4, fixed_abs, tag = 'smem constant byte address 0x4 - core index']
  #allocation1 [shape = 'u32[72,128]{1,0:T(1,128)}', space=vmem, size = 0x9000, scoped, tag = 'internal scratch']
  %s0 = inlined_call_operand.vmem [shape: bf16[512,16], index: 0, kind: input, shape index: {}]
  %s1 = inlined_call_operand.vmem [shape: bf16[16,128], index: 1, kind: input, shape index: {}]
  %s2 = inlined_call_operand.vmem [shape: f32[1,128], index: 2, kind: input, shape index: {}]
  %s3 = inlined_call_operand.vmem [shape: bf16[512,32], index: 3, kind: output, shape index: {0}]
  %s4 = inlined_call_operand.vmem [shape: bf16[512,32], index: 4, kind: output, shape index: {1}]
  %s5 = inlined_call_operand.vmem [shape: bf16[512,32], index: 5, kind: output, shape index: {2}]
  %s6 = inlined_call_operand.vmem [shape: f32[512,32], index: 6, kind: output, shape index: {3}]
  %7 = xla_tuple %s3, %s4, %s5, %s6
  %s8 = sld [smem:[#allocation0]]
  $region69: #{tpu_custom_call.1} parent=0
    _
  %s10 = ssub.s32 1, %s8
  %s11 = scalar_select 0, %s10, %s8
  loop: start=0, step=1, limit=4
  $region2: #{tpu_custom_call.1} parent=0 // loop_pre_header
    _
  $region3: #{tpu_custom_call.1} parent=0 // loop_header
    %s13 = sphi 0, %s17
    %p14 = scmp.ge.s32.totalorder %s13, 4
    %s23 = sphi 0, %s25
    %s26 = sphi 0, %s23
    %s27 = sphi 0, %s26
    %s43 = sphi 0, %s27
    %s47 = sphi 0, %s47
    %s49 = sphi 0, %s47
    %s50 = sphi 0, %s49
    %s64 = sphi 0, %s50
    %s68 = sphi 0, %s68
    %s70 = sphi 0, %s68
    %s71 = sphi 0, %s70
    %s85 = sphi 0, %s71
    %s91 = sphi 0, %s93
    %s94 = sphi 0, %s91
    %s95 = sphi 0, %s94
    %s111 = sphi 0, %s95
    %s117 = sphi 0, %s119
    %s120 = sphi 0, %s117
    %s121 = sphi 0, %s120
    %s137 = sphi 0, %s121
    %s143 = sphi 0, %s145
    %s146 = sphi 0, %s143
    %s147 = sphi 0, %s146
    %s163 = sphi 0, %s147
    %s169 = sphi 0, %s171
    %s172 = sphi 0, %s169
    %s173 = sphi 0, %s172
    %s189 = sphi 0, %s173
  $region4: #{tpu_custom_call.1} parent=0 // loop_header_branch
    %16 = sbr.rel (%p14) target = $region8
  $region5: #{tpu_custom_call.1} parent=0 // loop_body
    %s18 = ssub.s32 %s13, 1
    %s19 = ssub.s32 %s13, 2
    %s20 = sadd.s32 %s13, 1
    %s21 = ssub.s32 %s13, %s20
    %p22 = scmp.eq.s32.totalorder %s21, 0
    %s24 = sadd.s32 %s23, 1
    %s25 = scalar_select %p22, %s23, %s24
    %p28 = pneg %p22
    %p29 = scmp.eq.s32.totalorder %s13, 1
    %p30 = por %p28, %p29
    %p31 = scmp.ne.s32.totalorder %s23, %s26
    %p32 = scmp.eq.s32.totalorder %s13, 0
    %p33 = por %p31, %p32
    %p34 = scmp.ne.s32.totalorder %s23, %s26
    %p35 = scmp.eq.s32.totalorder %s18, 1
    %p36 = por %p34, %p35
    %p37 = scmp.ne.s32.totalorder %s26, %s27
    %p38 = scmp.eq.s32.totalorder %s18, 0
    %p39 = por %p37, %p38
    %p40 = scmp.ne.s32.totalorder %s26, %s27
    %p41 = scmp.eq.s32.totalorder %s19, 1
    %p42 = por %p40, %p41
    %p44 = scmp.ne.s32.totalorder %s27, %s43
    %p45 = scmp.eq.s32.totalorder %s19, 0
    %p46 = por %p44, %p45
    %s48 = sadd.s32 %s47, 1
    %p51 = scmp.eq.s32.totalorder %s13, 1
    %p52 = scmp.ne.s32.totalorder %s47, %s49
    %p53 = scmp.eq.s32.totalorder %s13, 0
    %p54 = por %p52, %p53
    %p55 = scmp.ne.s32.totalorder %s47, %s49
    %p56 = scmp.eq.s32.totalorder %s18, 1
    %p57 = por %p55, %p56
    %p58 = scmp.ne.s32.totalorder %s49, %s50
    %p59 = scmp.eq.s32.totalorder %s18, 0
    %p60 = por %p58, %p59
    %p61 = scmp.ne.s32.totalorder %s49, %s50
    %p62 = scmp.eq.s32.totalorder %s19, 1
    %p63 = por %p61, %p62
    %p65 = scmp.ne.s32.totalorder %s50, %s64
    %p66 = scmp.eq.s32.totalorder %s19, 0
    %p67 = por %p65, %p66
    %s69 = sadd.s32 %s68, 1
    %p72 = scmp.eq.s32.totalorder %s13, 1
    %p73 = scmp.ne.s32.totalorder %s68, %s70
    %p74 = scmp.eq.s32.totalorder %s13, 0
    %p75 = por %p73, %p74
    %p76 = scmp.ne.s32.totalorder %s68, %s70
    %p77 = scmp.eq.s32.totalorder %s18, 1
    %p78 = por %p76, %p77
    %p79 = scmp.ne.s32.totalorder %s70, %s71
    %p80 = scmp.eq.s32.totalorder %s18, 0
    %p81 = por %p79, %p80
    %p82 = scmp.ne.s32.totalorder %s70, %s71
    %p83 = scmp.eq.s32.totalorder %s19, 1
    %p84 = por %p82, %p83
    %p86 = scmp.ne.s32.totalorder %s71, %s85
    %p87 = scmp.eq.s32.totalorder %s19, 0
    %p88 = por %p86, %p87
    %s89 = ssub.s32 %s13, %s20
    %p90 = scmp.eq.s32.totalorder %s89, 0
    %s92 = sadd.s32 %s91, 1
    %s93 = scalar_select %p90, %s91, %s92
    %p96 = pneg %p90
    %p97 = scmp.eq.s32.totalorder %s13, 1
    %p98 = por %p96, %p97
    %p99 = scmp.ne.s32.totalorder %s91, %s94
    %p100 = scmp.eq.s32.totalorder %s13, 0
    %p101 = por %p99, %p100
    %p102 = scmp.ne.s32.totalorder %s91, %s94
    %p103 = scmp.eq.s32.totalorder %s18, 1
    %p104 = por %p102, %p103
    %p105 = scmp.ne.s32.totalorder %s94, %s95
    %p106 = scmp.eq.s32.totalorder %s18, 0
    %p107 = por %p105, %p106
    %p108 = scmp.ne.s32.totalorder %s94, %s95
    %p109 = scmp.eq.s32.totalorder %s19, 1
    %p110 = por %p108, %p109
    %p112 = scmp.ne.s32.totalorder %s95, %s111
    %p113 = scmp.eq.s32.totalorder %s19, 0
    %p114 = por %p112, %p113
    %s115 = ssub.s32 %s13, %s20
    %p116 = scmp.eq.s32.totalorder %s115, 0
    %s118 = sadd.s32 %s117, 1
    %s119 = scalar_select %p116, %s117, %s118
    %p122 = pneg %p116
    %p123 = scmp.eq.s32.totalorder %s13, 1
    %p124 = por %p122, %p123
    %p125 = scmp.ne.s32.totalorder %s117, %s120
    %p126 = scmp.eq.s32.totalorder %s13, 0
    %p127 = por %p125, %p126
    %p128 = scmp.ne.s32.totalorder %s117, %s120
    %p129 = scmp.eq.s32.totalorder %s18, 1
    %p130 = por %p128, %p129
    %p131 = scmp.ne.s32.totalorder %s120, %s121
    %p132 = scmp.eq.s32.totalorder %s18, 0
    %p133 = por %p131, %p132
    %p134 = scmp.ne.s32.totalorder %s120, %s121
    %p135 = scmp.eq.s32.totalorder %s19, 1
    %p136 = por %p134, %p135
    %p138 = scmp.ne.s32.totalorder %s121, %s137
    %p139 = scmp.eq.s32.totalorder %s19, 0
    %p140 = por %p138, %p139
    %s141 = ssub.s32 %s13, %s20
    %p142 = scmp.eq.s32.totalorder %s141, 0
    %s144 = sadd.s32 %s143, 1
    %s145 = scalar_select %p142, %s143, %s144
    %p148 = pneg %p142
    %p149 = scmp.eq.s32.totalorder %s13, 1
    %p150 = por %p148, %p149
    %p151 = scmp.ne.s32.totalorder %s143, %s146
    %p152 = scmp.eq.s32.totalorder %s13, 0
    %p153 = por %p151, %p152
    %p154 = scmp.ne.s32.totalorder %s143, %s146
    %p155 = scmp.eq.s32.totalorder %s18, 1
    %p156 = por %p154, %p155
    %p157 = scmp.ne.s32.totalorder %s146, %s147
    %p158 = scmp.eq.s32.totalorder %s18, 0
    %p159 = por %p157, %p158
    %p160 = scmp.ne.s32.totalorder %s146, %s147
    %p161 = scmp.eq.s32.totalorder %s19, 1
    %p162 = por %p160, %p161
    %p164 = scmp.ne.s32.totalorder %s147, %s163
    %p165 = scmp.eq.s32.totalorder %s19, 0
    %p166 = por %p164, %p165
    %s167 = ssub.s32 %s13, %s20
    %p168 = scmp.eq.s32.totalorder %s167, 0
    %s170 = sadd.s32 %s169, 1
    %s171 = scalar_select %p168, %s169, %s170
    %p174 = pneg %p168
    %p175 = scmp.eq.s32.totalorder %s13, 1
    %p176 = por %p174, %p175
    %p177 = scmp.ne.s32.totalorder %s169, %s172
    %p178 = scmp.eq.s32.totalorder %s13, 0
    %p179 = por %p177, %p178
    %p180 = scmp.ne.s32.totalorder %s169, %s172
    %p181 = scmp.eq.s32.totalorder %s18, 1
    %p182 = por %p180, %p181
    %p183 = scmp.ne.s32.totalorder %s172, %s173
    %p184 = scmp.eq.s32.totalorder %s18, 0
    %p185 = por %p183, %p184
    %p186 = scmp.ne.s32.totalorder %s172, %s173
    %p187 = scmp.eq.s32.totalorder %s19, 1
    %p188 = por %p186, %p187
    %p190 = scmp.ne.s32.totalorder %s173, %s189
    %p191 = scmp.eq.s32.totalorder %s19, 0
    %p192 = por %p190, %p191
    %p193 = scmp.le.s32.totalorder 1, %s13
    %p194 = scmp.lt.s32.totalorder %s13, 3
    %p195 = pnand %p193, %p194
    %p196 = pneg %p195
    // Predicated region
    $region9: #{tpu_custom_call.1} parent=5 // pred_check
      _
    $region10: #{tpu_custom_call.1} parent=5 // pred_check_branch
      %198 = sbr.rel (%p195) target = $region12
    $region11: #{tpu_custom_call.1} parent=5 // pred_region
      %s199 = ssub.s32 %s13, 1
      // Predicated region
      $region13: #{tpu_custom_call.1} parent=11 // pred_check
        %p200 = pneg %p60
      $region14: #{tpu_custom_call.1} parent=11 // pred_check_branch
        %202 = sbr.rel (%p200) target = $region16
      $region15: #{tpu_custom_call.1} parent=11 // pred_region
        _
      $region16: #{tpu_custom_call.1} parent=11 // pred_fallthru
        _
      // Predicated region
      $region17: #{tpu_custom_call.1} parent=11 // pred_check
        %p203 = pneg %p81
      $region18: #{tpu_custom_call.1} parent=11 // pred_check_branch
        %205 = sbr.rel (%p203) target = $region20
      $region19: #{tpu_custom_call.1} parent=11 // pred_region
        _
      $region20: #{tpu_custom_call.1} parent=11 // pred_fallthru
        _
    $region12: #{tpu_custom_call.1} parent=5 // pred_fallthru
      _
    %p206 = scmp.lt.s32.totalorder %s13, 2
    // Predicated region
    $region21: #{tpu_custom_call.1} parent=5 // pred_check
      %p207 = pneg %p206
    $region22: #{tpu_custom_call.1} parent=5 // pred_check_branch
      %209 = sbr.rel (%p207) target = $region24
    $region23: #{tpu_custom_call.1} parent=5 // pred_region
      // Predicated region
      $region25: #{tpu_custom_call.1} parent=23 // pred_check
        %p210 = pneg %p33
      $region26: #{tpu_custom_call.1} parent=23 // pred_check_branch
        %212 = sbr.rel (%p210) target = $region28
      $region27: #{tpu_custom_call.1} parent=23 // pred_region
        %s213 = smul.u32 32, %s13
        %p214 = scmp.lt.s32.totalorder %s213, 63
        %s215 = scalar_select %p214, %s213, 63
        %s216 = smul.addr %s215, 4
        %s217 = scalar_lea.vmem %s0, %s216
        %s218 = smul.u32 32, %s13
      $region28: #{tpu_custom_call.1} parent=23 // pred_fallthru
        _
    $region24: #{tpu_custom_call.1} parent=5 // pred_fallthru
      _
    %p219 = scmp.le.s32.totalorder 1, %s13
    %p220 = scmp.lt.s32.totalorder %s13, 3
    %p221 = pnand %p219, %p220
    %p222 = pneg %p221
    // Predicated region
    $region29: #{tpu_custom_call.1} parent=5 // pred_check
      _
    $region30: #{tpu_custom_call.1} parent=5 // pred_check_branch
      %224 = sbr.rel (%p221) target = $region32
    $region31: #{tpu_custom_call.1} parent=5 // pred_region
      %s225 = ssub.s32 %s13, 1
      %s226 = smul.u32 32, %s18
      %p227 = scmp.lt.s32.totalorder %s226, 63
      %s228 = scalar_select %p227, %s226, 63
      %s229 = smul.addr %s228, 4
      %s230 = scalar_lea.vmem %s0, %s229
      %p231 = pneg %p39
      %p232 = pneg %p36
      %p233 = pneg %p60
      %p234 = pneg %p57
      %p235 = pneg %p81
      %p236 = pneg %p78
      %p237 = pneg %p107
      %p238 = pneg %p104
      %s239 = smul.u32 32, %s18
      %p240 = scmp.lt.s32.totalorder %s239, 63
      %s241 = scalar_select %p240, %s239, 63
      %s242 = smul.addr %s241, 4
      %s243 = scalar_lea.vmem %s3, %s242
      %p244 = pneg %p133
      %p245 = pneg %p130
      %s246 = smul.u32 32, %s18
      %p247 = scmp.lt.s32.totalorder %s246, 63
      %s248 = scalar_select %p247, %s246, 63
      %s249 = smul.addr %s248, 4
      %s250 = scalar_lea.vmem %s4, %s249
      %p251 = pneg %p159
      %p252 = pneg %p156
      %s253 = smul.u32 32, %s18
      %p254 = scmp.lt.s32.totalorder %s253, 63
      %s255 = scalar_select %p254, %s253, 63
      %s256 = smul.addr %s255, 4
      %s257 = scalar_lea.vmem %s5, %s256
      %p258 = pneg %p185
      %p259 = pneg %p182
      %s260 = smul.u32 32, %s18
      %p261 = scmp.lt.s32.totalorder %s260, 63
      %s262 = scalar_select %p261, %s260, 63
      %s263 = smul.addr %s262, 8
      %s264 = scalar_lea.vmem %s6, %s263
      %s265 = smul.u32 32, %s18
      %p266 = scmp.lt.s32.totalorder %s265, 63
      %s267 = scalar_select %p266, %s265, 63
      %s268 = smul.addr %s267, 4
      %s269 = scalar_lea.vmem %s0, %s268
      %s270 = smul.u32 32, %s18
      %s271 = smul.u32 32, %s18
      %p272 = scmp.lt.s32.totalorder %s271, 63
      %s273 = scalar_select %p272, %s271, 63
      %s274 = smul.addr %s273, 4
      %s275 = scalar_lea.vmem %s3, %s274
      %s276 = smul.u32 32, %s18
      %s277 = smul.u32 32, %s18
      %p278 = scmp.lt.s32.totalorder %s277, 63
      %s279 = scalar_select %p278, %s277, 63
      %s280 = smul.addr %s279, 4
      %s281 = scalar_lea.vmem %s4, %s280
      %s282 = smul.u32 32, %s18
      %s283 = smul.u32 32, %s18
      %p284 = scmp.lt.s32.totalorder %s283, 63
      %s285 = scalar_select %p284, %s283, 63
      %s286 = smul.addr %s285, 4
      %s287 = scalar_lea.vmem %s5, %s286
      %s288 = smul.u32 32, %s18
      %s289 = smul.u32 32, %s18
      %p290 = scmp.lt.s32.totalorder %s289, 63
      %s291 = scalar_select %p290, %s289, 63
      %s292 = smul.addr %s291, 8
      %s293 = scalar_lea.vmem %s6, %s292
      %s294 = smul.u32 32, %s18
      %v296 = vld [vmem:[%s269] sm:$0xf]
      %v297 = vld [vmem:[%s269 + $0x4] sm:$0xf]
      %v298 = vld [vmem:[%s269 + $0x8] sm:$0xf]
      %v299 = vld [vmem:[%s269 + $0xc] sm:$0xf]
      %v300 = vld [vmem:[%s269 + $0x10] sm:$0xf]
      %v301 = vld [vmem:[%s269 + $0x14] sm:$0xf]
      %v302 = vld [vmem:[%s269 + $0x18] sm:$0xf]
      %v303 = vld [vmem:[%s269 + $0x1c] sm:$0xf]
      %v304 = vld [vmem:[%s269 + $0x20] sm:$0xf]
      %v305 = vld [vmem:[%s269 + $0x24] sm:$0xf]
      %v306 = vld [vmem:[%s269 + $0x28] sm:$0xf]
      %v307 = vld [vmem:[%s269 + $0x2c] sm:$0xf]
      %v308 = vld [vmem:[%s269 + $0x30] sm:$0xf]
      %v309 = vld [vmem:[%s269 + $0x34] sm:$0xf]
      %v310 = vld [vmem:[%s269 + $0x38] sm:$0xf]
      %v311 = vld [vmem:[%s269 + $0x3c] sm:$0xf]
      %v312 = vld [vmem:[%s269 + $0x40] sm:$0xf]
      %v313 = vld [vmem:[%s269 + $0x44] sm:$0xf]
      %v314 = vld [vmem:[%s269 + $0x48] sm:$0xf]
      %v315 = vld [vmem:[%s269 + $0x4c] sm:$0xf]
      %v316 = vld [vmem:[%s269 + $0x50] sm:$0xf]
      %v317 = vld [vmem:[%s269 + $0x54] sm:$0xf]
      %v318 = vld [vmem:[%s269 + $0x58] sm:$0xf]
      %v319 = vld [vmem:[%s269 + $0x5c] sm:$0xf]
      %v320 = vld [vmem:[%s269 + $0x60] sm:$0xf]
      %v321 = vld [vmem:[%s269 + $0x64] sm:$0xf]
      %v322 = vld [vmem:[%s269 + $0x68] sm:$0xf]
      %v323 = vld [vmem:[%s269 + $0x6c] sm:$0xf]
      %v324 = vld [vmem:[%s269 + $0x70] sm:$0xf]
      %v325 = vld [vmem:[%s269 + $0x74] sm:$0xf]
      %v326 = vld [vmem:[%s269 + $0x78] sm:$0xf]
      %v327 = vld [vmem:[%s269 + $0x7c] sm:$0xf]
      %v328 = vld [vmem:[%s1] sm:$0xf]
      %v329 = vld [vmem:[%s1 + $0x4] sm:$0xf]
      %v330 = vld [vmem:[%s2] sm:$0x1]
      %v332 = vperm.slane %v330, 0
      %v366 = vunpack.c.l.b16 %v296
      %v367 = vunpack.c.l.b16 %v297
      %v368 = vunpack.c.l.b16 %v298
      %v369 = vunpack.c.l.b16 %v299
      %v370 = vunpack.c.l.b16 %v300
      %v371 = vunpack.c.l.b16 %v301
      %v372 = vunpack.c.l.b16 %v302
      %v373 = vunpack.c.l.b16 %v303
      %v374 = vunpack.c.l.b16 %v304
      %v375 = vunpack.c.l.b16 %v305
      %v376 = vunpack.c.l.b16 %v306
      %v377 = vunpack.c.l.b16 %v307
      %v378 = vunpack.c.l.b16 %v308
      %v379 = vunpack.c.l.b16 %v309
      %v380 = vunpack.c.l.b16 %v310
      %v381 = vunpack.c.l.b16 %v311
      %v382 = vunpack.c.l.b16 %v312
      %v383 = vunpack.c.l.b16 %v313
      %v384 = vunpack.c.l.b16 %v314
      %v385 = vunpack.c.l.b16 %v315
      %v386 = vunpack.c.l.b16 %v316
      %v387 = vunpack.c.l.b16 %v317
      %v388 = vunpack.c.l.b16 %v318
      %v389 = vunpack.c.l.b16 %v319
      %v390 = vunpack.c.l.b16 %v320
      %v391 = vunpack.c.l.b16 %v321
      %v392 = vunpack.c.l.b16 %v322
      %v393 = vunpack.c.l.b16 %v323
      %v394 = vunpack.c.l.b16 %v324
      %v395 = vunpack.c.l.b16 %v325
      %v396 = vunpack.c.l.b16 %v326
      %v397 = vunpack.c.l.b16 %v327
      %v398 = vpack.c.b16 %v367, %v366
      %v399 = vpack.c.b16 %v369, %v368
      %v400 = vpack.c.b16 %v371, %v370
      %v401 = vpack.c.b16 %v373, %v372
      %v402 = vpack.c.b16 %v375, %v374
      %v403 = vpack.c.b16 %v377, %v376
      %v404 = vpack.c.b16 %v379, %v378
      %v405 = vpack.c.b16 %v381, %v380
      %v406 = vpack.c.b16 %v383, %v382
      %v407 = vpack.c.b16 %v385, %v384
      %v408 = vpack.c.b16 %v387, %v386
      %v409 = vpack.c.b16 %v389, %v388
      %v410 = vpack.c.b16 %v391, %v390
      %v411 = vpack.c.b16 %v393, %v392
      %v412 = vpack.c.b16 %v395, %v394
      %v413 = vpack.c.b16 %v397, %v396
      %v416 = vunpack.c.l.b16 %v328
      %v417 = vunpack.c.l.b16 %v329
      %v418 = vpack.c.b16 %v417, %v416
      %vm420 = vcmask 130048
      %v422 = vsel %vm420, %v398, 0
      %v425 = vsel %vm420, %v399, 0
      %v428 = vsel %vm420, %v400, 0
      %v431 = vsel %vm420, %v401, 0
      %v434 = vsel %vm420, %v402, 0
      %v437 = vsel %vm420, %v403, 0
      %v440 = vsel %vm420, %v404, 0
      %v443 = vsel %vm420, %v405, 0
      %v446 = vsel %vm420, %v406, 0
      %v449 = vsel %vm420, %v407, 0
      %v452 = vsel %vm420, %v408, 0
      %v455 = vsel %vm420, %v409, 0
      %v458 = vsel %vm420, %v410, 0
      %v461 = vsel %vm420, %v411, 0
      %v464 = vsel %vm420, %v412, 0
      %v467 = vsel %vm420, %v413, 0
      %469 = vmatpush.bf16.msra.mxu0 0
      %470 = vmatpush.bf16.msra.mxu0 0
      %471 = vmatpush.bf16.msra.mxu0 0
      %472 = vmatpush.bf16.msra.mxu0 0
      %473 = vmatpush.bf16.msra.mxu0 0
      %474 = vmatpush.bf16.msra.mxu0 0
      %475 = vmatpush.bf16.msra.mxu0 0
      %476 = vmatpush.bf16.msra.mxu0 %v418
      %477 = vmatmul.bf16.gmra.mxu0 %v422
      %v478 = vpop.f32.mrf.mxu0
      %v479 = vadd.f32 %v332, %v478
      %v480 = vpop.f32.mrf.mxu0
      %v481 = vadd.f32 %v332, %v480
      %482 = vmatmul.bf16.gmra.mxu0 %v425
      %v483 = vpop.f32.mrf.mxu0
      %v484 = vadd.f32 %v332, %v483
      %v485 = vpop.f32.mrf.mxu0
      %v486 = vadd.f32 %v332, %v485
      %487 = vmatmul.bf16.gmra.mxu0 %v428
      %v488 = vpop.f32.mrf.mxu0
      %v489 = vadd.f32 %v332, %v488
      %v490 = vpop.f32.mrf.mxu0
      %v491 = vadd.f32 %v332, %v490
      %492 = vmatmul.bf16.gmra.mxu0 %v431
      %v493 = vpop.f32.mrf.mxu0
      %v494 = vadd.f32 %v332, %v493
      %v495 = vpop.f32.mrf.mxu0
      %v496 = vadd.f32 %v332, %v495
      %497 = vmatmul.bf16.gmra.mxu0 %v434
      %v498 = vpop.f32.mrf.mxu0
      %v499 = vadd.f32 %v332, %v498
      %v500 = vpop.f32.mrf.mxu0
      %v501 = vadd.f32 %v332, %v500
      %502 = vmatmul.bf16.gmra.mxu0 %v437
      %v503 = vpop.f32.mrf.mxu0
      %v504 = vadd.f32 %v332, %v503
      %v505 = vpop.f32.mrf.mxu0
      %v506 = vadd.f32 %v332, %v505
      %507 = vmatmul.bf16.gmra.mxu0 %v440
      %v508 = vpop.f32.mrf.mxu0
      %v509 = vadd.f32 %v332, %v508
      %v510 = vpop.f32.mrf.mxu0
      %v511 = vadd.f32 %v332, %v510
      %512 = vmatmul.bf16.gmra.mxu0 %v443
      %v513 = vpop.f32.mrf.mxu0
      %v514 = vadd.f32 %v332, %v513
      %v515 = vpop.f32.mrf.mxu0
      %v516 = vadd.f32 %v332, %v515
      %517 = vmatmul.bf16.gmra.mxu0 %v446
      %v518 = vpop.f32.mrf.mxu0
      %v519 = vadd.f32 %v332, %v518
      %v520 = vpop.f32.mrf.mxu0
      %v521 = vadd.f32 %v332, %v520
      %522 = vmatmul.bf16.gmra.mxu0 %v449
      %v523 = vpop.f32.mrf.mxu0
      %v524 = vadd.f32 %v332, %v523
      %v525 = vpop.f32.mrf.mxu0
      %v526 = vadd.f32 %v332, %v525
      %527 = vmatmul.bf16.gmra.mxu0 %v452
      %v528 = vpop.f32.mrf.mxu0
      %v529 = vadd.f32 %v332, %v528
      %v530 = vpop.f32.mrf.mxu0
      %v531 = vadd.f32 %v332, %v530
      %532 = vmatmul.bf16.gmra.mxu0 %v455
      %v533 = vpop.f32.mrf.mxu0
      %v534 = vadd.f32 %v332, %v533
      %v535 = vpop.f32.mrf.mxu0
      %v536 = vadd.f32 %v332, %v535
      %537 = vmatmul.bf16.gmra.mxu0 %v458
      %v538 = vpop.f32.mrf.mxu0
      %v539 = vadd.f32 %v332, %v538
      %v540 = vpop.f32.mrf.mxu0
      %v541 = vadd.f32 %v332, %v540
      %542 = vmatmul.bf16.gmra.mxu0 %v461
      %v543 = vpop.f32.mrf.mxu0
      %v544 = vadd.f32 %v332, %v543
      %v545 = vpop.f32.mrf.mxu0
      %v546 = vadd.f32 %v332, %v545
      %547 = vmatmul.bf16.gmra.mxu0 %v464
      %v548 = vpop.f32.mrf.mxu0
      %v549 = vadd.f32 %v332, %v548
      %v550 = vpop.f32.mrf.mxu0
      %v551 = vadd.f32 %v332, %v550
      %552 = vmatmul.bf16.gmra.mxu0 %v467
      %v553 = vpop.f32.mrf.mxu0
      %v554 = vadd.f32 %v332, %v553
      %v555 = vpop.f32.mrf.mxu0
      %v556 = vadd.f32 %v332, %v555
      %557 = vdwg.mxu0
      %v558 = vpack.c.bf16 %v479, %v479
      %v559 = vpack.c.bf16 %v481, %v481
      %v560 = vpack.c.bf16 %v484, %v484
      %v561 = vpack.c.bf16 %v486, %v486
      %v562 = vpack.c.bf16 %v489, %v489
      %v563 = vpack.c.bf16 %v491, %v491
      %v564 = vpack.c.bf16 %v494, %v494
      %v565 = vpack.c.bf16 %v496, %v496
      %v566 = vpack.c.bf16 %v499, %v499
      %v567 = vpack.c.bf16 %v501, %v501
      %v568 = vpack.c.bf16 %v504, %v504
      %v569 = vpack.c.bf16 %v506, %v506
      %v570 = vpack.c.bf16 %v509, %v509
      %v571 = vpack.c.bf16 %v511, %v511
      %v572 = vpack.c.bf16 %v514, %v514
      %v573 = vpack.c.bf16 %v516, %v516
      %v574 = vpack.c.bf16 %v519, %v519
      %v575 = vpack.c.bf16 %v521, %v521
      %v576 = vpack.c.bf16 %v524, %v524
      %v577 = vpack.c.bf16 %v526, %v526
      %v578 = vpack.c.bf16 %v529, %v529
      %v579 = vpack.c.bf16 %v531, %v531
      %v580 = vpack.c.bf16 %v534, %v534
      %v581 = vpack.c.bf16 %v536, %v536
      %v582 = vpack.c.bf16 %v539, %v539
      %v583 = vpack.c.bf16 %v541, %v541
      %v584 = vpack.c.bf16 %v544, %v544
      %v585 = vpack.c.bf16 %v546, %v546
      %v586 = vpack.c.bf16 %v549, %v549
      %v587 = vpack.c.bf16 %v551, %v551
      %v588 = vpack.c.bf16 %v554, %v554
      %v589 = vpack.c.bf16 %v556, %v556
      %vm590 = vcmask 257024
      %591 = vst.msk [vmem:[%s275] sm:$0xf] %vm590, %v558
      %592 = vst.msk [vmem:[%s275 + $0x4] sm:$0xf] %vm590, %v559
      %593 = vst.msk [vmem:[%s275 + $0x8] sm:$0xf] %vm590, %v560
      %594 = vst.msk [vmem:[%s275 + $0xc] sm:$0xf] %vm590, %v561
      %595 = vst.msk [vmem:[%s275 + $0x10] sm:$0xf] %vm590, %v562
      %596 = vst.msk [vmem:[%s275 + $0x14] sm:$0xf] %vm590, %v563
      %597 = vst.msk [vmem:[%s275 + $0x18] sm:$0xf] %vm590, %v564
      %598 = vst.msk [vmem:[%s275 + $0x1c] sm:$0xf] %vm590, %v565
      %599 = vst.msk [vmem:[%s275 + $0x20] sm:$0xf] %vm590, %v566
      %600 = vst.msk [vmem:[%s275 + $0x24] sm:$0xf] %vm590, %v567
      %601 = vst.msk [vmem:[%s275 + $0x28] sm:$0xf] %vm590, %v568
      %602 = vst.msk [vmem:[%s275 + $0x2c] sm:$0xf] %vm590, %v569
      %603 = vst.msk [vmem:[%s275 + $0x30] sm:$0xf] %vm590, %v570
      %604 = vst.msk [vmem:[%s275 + $0x34] sm:$0xf] %vm590, %v571
      %605 = vst.msk [vmem:[%s275 + $0x38] sm:$0xf] %vm590, %v572
      %606 = vst.msk [vmem:[%s275 + $0x3c] sm:$0xf] %vm590, %v573
      %607 = vst.msk [vmem:[%s275 + $0x40] sm:$0xf] %vm590, %v574
      %608 = vst.msk [vmem:[%s275 + $0x44] sm:$0xf] %vm590, %v575
      %609 = vst.msk [vmem:[%s275 + $0x48] sm:$0xf] %vm590, %v576
      %610 = vst.msk [vmem:[%s275 + $0x4c] sm:$0xf] %vm590, %v577
      %611 = vst.msk [vmem:[%s275 + $0x50] sm:$0xf] %vm590, %v578
      %612 = vst.msk [vmem:[%s275 + $0x54] sm:$0xf] %vm590, %v579
      %613 = vst.msk [vmem:[%s275 + $0x58] sm:$0xf] %vm590, %v580
      %614 = vst.msk [vmem:[%s275 + $0x5c] sm:$0xf] %vm590, %v581
      %615 = vst.msk [vmem:[%s275 + $0x60] sm:$0xf] %vm590, %v582
      %616 = vst.msk [vmem:[%s275 + $0x64] sm:$0xf] %vm590, %v583
      %617 = vst.msk [vmem:[%s275 + $0x68] sm:$0xf] %vm590, %v584
      %618 = vst.msk [vmem:[%s275 + $0x6c] sm:$0xf] %vm590, %v585
      %619 = vst.msk [vmem:[%s275 + $0x70] sm:$0xf] %vm590, %v586
      %620 = vst.msk [vmem:[%s275 + $0x74] sm:$0xf] %vm590, %v587
      %621 = vst.msk [vmem:[%s275 + $0x78] sm:$0xf] %vm590, %v588
      %622 = vst.msk [vmem:[%s275 + $0x7c] sm:$0xf] %vm590, %v589
      %655 = vrot.lane.b32.xlu0 %v558, 96
      %v656 = vpop.permute.xlu0 %655
      %657 = vrot.lane.b32.xlu0 %v559, 96
      %v658 = vpop.permute.xlu0 %657
      %659 = vrot.lane.b32.xlu0 %v560, 96
      %v660 = vpop.permute.xlu0 %659
      %661 = vrot.lane.b32.xlu0 %v561, 96
      %v662 = vpop.permute.xlu0 %661
      %663 = vrot.lane.b32.xlu0 %v562, 96
      %v664 = vpop.permute.xlu0 %663
      %665 = vrot.lane.b32.xlu0 %v563, 96
      %v666 = vpop.permute.xlu0 %665
      %667 = vrot.lane.b32.xlu0 %v564, 96
      %v668 = vpop.permute.xlu0 %667
      %669 = vrot.lane.b32.xlu0 %v565, 96
      %v670 = vpop.permute.xlu0 %669
      %671 = vrot.lane.b32.xlu0 %v566, 96
      %v672 = vpop.permute.xlu0 %671
      %673 = vrot.lane.b32.xlu0 %v567, 96
      %v674 = vpop.permute.xlu0 %673
      %675 = vrot.lane.b32.xlu0 %v568, 96
      %v676 = vpop.permute.xlu0 %675
      %677 = vrot.lane.b32.xlu0 %v569, 96
      %v678 = vpop.permute.xlu0 %677
      %679 = vrot.lane.b32.xlu0 %v570, 96
      %v680 = vpop.permute.xlu0 %679
      %681 = vrot.lane.b32.xlu0 %v571, 96
      %v682 = vpop.permute.xlu0 %681
      %683 = vrot.lane.b32.xlu0 %v572, 96
      %v684 = vpop.permute.xlu0 %683
      %685 = vrot.lane.b32.xlu0 %v573, 96
      %v686 = vpop.permute.xlu0 %685
      %687 = vrot.lane.b32.xlu0 %v574, 96
      %v688 = vpop.permute.xlu0 %687
      %689 = vrot.lane.b32.xlu0 %v575, 96
      %v690 = vpop.permute.xlu0 %689
      %691 = vrot.lane.b32.xlu0 %v576, 96
      %v692 = vpop.permute.xlu0 %691
      %693 = vrot.lane.b32.xlu0 %v577, 96
      %v694 = vpop.permute.xlu0 %693
      %695 = vrot.lane.b32.xlu0 %v578, 96
      %v696 = vpop.permute.xlu0 %695
      %697 = vrot.lane.b32.xlu0 %v579, 96
      %v698 = vpop.permute.xlu0 %697
      %699 = vrot.lane.b32.xlu0 %v580, 96
      %v700 = vpop.permute.xlu0 %699
      %701 = vrot.lane.b32.xlu0 %v581, 96
      %v702 = vpop.permute.xlu0 %701
      %703 = vrot.lane.b32.xlu0 %v582, 96
      %v704 = vpop.permute.xlu0 %703
      %705 = vrot.lane.b32.xlu0 %v583, 96
      %v706 = vpop.permute.xlu0 %705
      %707 = vrot.lane.b32.xlu0 %v584, 96
      %v708 = vpop.permute.xlu0 %707
      %709 = vrot.lane.b32.xlu0 %v585, 96
      %v710 = vpop.permute.xlu0 %709
      %711 = vrot.lane.b32.xlu0 %v586, 96
      %v712 = vpop.permute.xlu0 %711
      %713 = vrot.lane.b32.xlu0 %v587, 96
      %v714 = vpop.permute.xlu0 %713
      %715 = vrot.lane.b32.xlu0 %v588, 96
      %v716 = vpop.permute.xlu0 %715
      %717 = vrot.lane.b32.xlu0 %v589, 96
      %v718 = vpop.permute.xlu0 %717
      %751 = vst.msk [vmem:[%s281] sm:$0xf] %vm590, %v656
      %752 = vst.msk [vmem:[%s281 + $0x4] sm:$0xf] %vm590, %v658
      %753 = vst.msk [vmem:[%s281 + $0x8] sm:$0xf] %vm590, %v660
      %754 = vst.msk [vmem:[%s281 + $0xc] sm:$0xf] %vm590, %v662
      %755 = vst.msk [vmem:[%s281 + $0x10] sm:$0xf] %vm590, %v664
      %756 = vst.msk [vmem:[%s281 + $0x14] sm:$0xf] %vm590, %v666
      %757 = vst.msk [vmem:[%s281 + $0x18] sm:$0xf] %vm590, %v668
      %758 = vst.msk [vmem:[%s281 + $0x1c] sm:$0xf] %vm590, %v670
      %759 = vst.msk [vmem:[%s281 + $0x20] sm:$0xf] %vm590, %v672
      %760 = vst.msk [vmem:[%s281 + $0x24] sm:$0xf] %vm590, %v674
      %761 = vst.msk [vmem:[%s281 + $0x28] sm:$0xf] %vm590, %v676
      %762 = vst.msk [vmem:[%s281 + $0x2c] sm:$0xf] %vm590, %v678
      %763 = vst.msk [vmem:[%s281 + $0x30] sm:$0xf] %vm590, %v680
      %764 = vst.msk [vmem:[%s281 + $0x34] sm:$0xf] %vm590, %v682
      %765 = vst.msk [vmem:[%s281 + $0x38] sm:$0xf] %vm590, %v684
      %766 = vst.msk [vmem:[%s281 + $0x3c] sm:$0xf] %vm590, %v686
      %767 = vst.msk [vmem:[%s281 + $0x40] sm:$0xf] %vm590, %v688
      %768 = vst.msk [vmem:[%s281 + $0x44] sm:$0xf] %vm590, %v690
      %769 = vst.msk [vmem:[%s281 + $0x48] sm:$0xf] %vm590, %v692
      %770 = vst.msk [vmem:[%s281 + $0x4c] sm:$0xf] %vm590, %v694
      %771 = vst.msk [vmem:[%s281 + $0x50] sm:$0xf] %vm590, %v696
      %772 = vst.msk [vmem:[%s281 + $0x54] sm:$0xf] %vm590, %v698
      %773 = vst.msk [vmem:[%s281 + $0x58] sm:$0xf] %vm590, %v700
      %774 = vst.msk [vmem:[%s281 + $0x5c] sm:$0xf] %vm590, %v702
      %775 = vst.msk [vmem:[%s281 + $0x60] sm:$0xf] %vm590, %v704
      %776 = vst.msk [vmem:[%s281 + $0x64] sm:$0xf] %vm590, %v706
      %777 = vst.msk [vmem:[%s281 + $0x68] sm:$0xf] %vm590, %v708
      %778 = vst.msk [vmem:[%s281 + $0x6c] sm:$0xf] %vm590, %v710
      %779 = vst.msk [vmem:[%s281 + $0x70] sm:$0xf] %vm590, %v712
      %780 = vst.msk [vmem:[%s281 + $0x74] sm:$0xf] %vm590, %v714
      %781 = vst.msk [vmem:[%s281 + $0x78] sm:$0xf] %vm590, %v716
      %782 = vst.msk [vmem:[%s281 + $0x7c] sm:$0xf] %vm590, %v718
      %783 = vrot.lane.b32.xlu0 %v558, 64
      %v784 = vpop.permute.xlu0 %783
      %785 = vrot.lane.b32.xlu0 %v559, 64
      %v786 = vpop.permute.xlu0 %785
      %787 = vrot.lane.b32.xlu0 %v560, 64
      %v788 = vpop.permute.xlu0 %787
      %789 = vrot.lane.b32.xlu0 %v561, 64
      %v790 = vpop.permute.xlu0 %789
      %791 = vrot.lane.b32.xlu0 %v562, 64
      %v792 = vpop.permute.xlu0 %791
      %793 = vrot.lane.b32.xlu0 %v563, 64
      %v794 = vpop.permute.xlu0 %793
      %795 = vrot.lane.b32.xlu0 %v564, 64
      %v796 = vpop.permute.xlu0 %795
      %797 = vrot.lane.b32.xlu0 %v565, 64
      %v798 = vpop.permute.xlu0 %797
      %799 = vrot.lane.b32.xlu0 %v566, 64
      %v800 = vpop.permute.xlu0 %799
      %801 = vrot.lane.b32.xlu0 %v567, 64
      %v802 = vpop.permute.xlu0 %801
      %803 = vrot.lane.b32.xlu0 %v568, 64
      %v804 = vpop.permute.xlu0 %803
      %805 = vrot.lane.b32.xlu0 %v569, 64
      %v806 = vpop.permute.xlu0 %805
      %807 = vrot.lane.b32.xlu0 %v570, 64
      %v808 = vpop.permute.xlu0 %807
      %809 = vrot.lane.b32.xlu0 %v571, 64
      %v810 = vpop.permute.xlu0 %809
      %811 = vrot.lane.b32.xlu0 %v572, 64
      %v812 = vpop.permute.xlu0 %811
      %813 = vrot.lane.b32.xlu0 %v573, 64
      %v814 = vpop.permute.xlu0 %813
      %815 = vrot.lane.b32.xlu0 %v574, 64
      %v816 = vpop.permute.xlu0 %815
      %817 = vrot.lane.b32.xlu0 %v575, 64
      %v818 = vpop.permute.xlu0 %817
      %819 = vrot.lane.b32.xlu0 %v576, 64
      %v820 = vpop.permute.xlu0 %819
      %821 = vrot.lane.b32.xlu0 %v577, 64
      %v822 = vpop.permute.xlu0 %821
      %823 = vrot.lane.b32.xlu0 %v578, 64
      %v824 = vpop.permute.xlu0 %823
      %825 = vrot.lane.b32.xlu0 %v579, 64
      %v826 = vpop.permute.xlu0 %825
      %827 = vrot.lane.b32.xlu0 %v580, 64
      %v828 = vpop.permute.xlu0 %827
      %829 = vrot.lane.b32.xlu0 %v581, 64
      %v830 = vpop.permute.xlu0 %829
      %831 = vrot.lane.b32.xlu0 %v582, 64
      %v832 = vpop.permute.xlu0 %831
      %833 = vrot.lane.b32.xlu0 %v583, 64
      %v834 = vpop.permute.xlu0 %833
      %835 = vrot.lane.b32.xlu0 %v584, 64
      %v836 = vpop.permute.xlu0 %835
      %837 = vrot.lane.b32.xlu0 %v585, 64
      %v838 = vpop.permute.xlu0 %837
      %839 = vrot.lane.b32.xlu0 %v586, 64
      %v840 = vpop.permute.xlu0 %839
      %841 = vrot.lane.b32.xlu0 %v587, 64
      %v842 = vpop.permute.xlu0 %841
      %843 = vrot.lane.b32.xlu0 %v588, 64
      %v844 = vpop.permute.xlu0 %843
      %845 = vrot.lane.b32.xlu0 %v589, 64
      %v846 = vpop.permute.xlu0 %845
      %879 = vst.msk [vmem:[%s287] sm:$0xf] %vm590, %v784
      %880 = vst.msk [vmem:[%s287 + $0x4] sm:$0xf] %vm590, %v786
      %881 = vst.msk [vmem:[%s287 + $0x8] sm:$0xf] %vm590, %v788
      %882 = vst.msk [vmem:[%s287 + $0xc] sm:$0xf] %vm590, %v790
      %883 = vst.msk [vmem:[%s287 + $0x10] sm:$0xf] %vm590, %v792
      %884 = vst.msk [vmem:[%s287 + $0x14] sm:$0xf] %vm590, %v794
      %885 = vst.msk [vmem:[%s287 + $0x18] sm:$0xf] %vm590, %v796
      %886 = vst.msk [vmem:[%s287 + $0x1c] sm:$0xf] %vm590, %v798
      %887 = vst.msk [vmem:[%s287 + $0x20] sm:$0xf] %vm590, %v800
      %888 = vst.msk [vmem:[%s287 + $0x24] sm:$0xf] %vm590, %v802
      %889 = vst.msk [vmem:[%s287 + $0x28] sm:$0xf] %vm590, %v804
      %890 = vst.msk [vmem:[%s287 + $0x2c] sm:$0xf] %vm590, %v806
      %891 = vst.msk [vmem:[%s287 + $0x30] sm:$0xf] %vm590, %v808
      %892 = vst.msk [vmem:[%s287 + $0x34] sm:$0xf] %vm590, %v810
      %893 = vst.msk [vmem:[%s287 + $0x38] sm:$0xf] %vm590, %v812
      %894 = vst.msk [vmem:[%s287 + $0x3c] sm:$0xf] %vm590, %v814
      %895 = vst.msk [vmem:[%s287 + $0x40] sm:$0xf] %vm590, %v816
      %896 = vst.msk [vmem:[%s287 + $0x44] sm:$0xf] %vm590, %v818
      %897 = vst.msk [vmem:[%s287 + $0x48] sm:$0xf] %vm590, %v820
      %898 = vst.msk [vmem:[%s287 + $0x4c] sm:$0xf] %vm590, %v822
      %899 = vst.msk [vmem:[%s287 + $0x50] sm:$0xf] %vm590, %v824
      %900 = vst.msk [vmem:[%s287 + $0x54] sm:$0xf] %vm590, %v826
      %901 = vst.msk [vmem:[%s287 + $0x58] sm:$0xf] %vm590, %v828
      %902 = vst.msk [vmem:[%s287 + $0x5c] sm:$0xf] %vm590, %v830
      %903 = vst.msk [vmem:[%s287 + $0x60] sm:$0xf] %vm590, %v832
      %904 = vst.msk [vmem:[%s287 + $0x64] sm:$0xf] %vm590, %v834
      %905 = vst.msk [vmem:[%s287 + $0x68] sm:$0xf] %vm590, %v836
      %906 = vst.msk [vmem:[%s287 + $0x6c] sm:$0xf] %vm590, %v838
      %907 = vst.msk [vmem:[%s287 + $0x70] sm:$0xf] %vm590, %v840
      %908 = vst.msk [vmem:[%s287 + $0x74] sm:$0xf] %vm590, %v842
      %909 = vst.msk [vmem:[%s287 + $0x78] sm:$0xf] %vm590, %v844
      %910 = vst.msk [vmem:[%s287 + $0x7c] sm:$0xf] %vm590, %v846
      %943 = vrot.lane.b32.xlu0 %v479, 32
      %v944 = vpop.permute.xlu0 %943
      %945 = vrot.lane.b32.xlu0 %v481, 32
      %v946 = vpop.permute.xlu0 %945
      %947 = vrot.lane.b32.xlu0 %v484, 32
      %v948 = vpop.permute.xlu0 %947
      %949 = vrot.lane.b32.xlu0 %v486, 32
      %v950 = vpop.permute.xlu0 %949
      %951 = vrot.lane.b32.xlu0 %v489, 32
      %v952 = vpop.permute.xlu0 %951
      %953 = vrot.lane.b32.xlu0 %v491, 32
      %v954 = vpop.permute.xlu0 %953
      %955 = vrot.lane.b32.xlu0 %v494, 32
      %v956 = vpop.permute.xlu0 %955
      %957 = vrot.lane.b32.xlu0 %v496, 32
      %v958 = vpop.permute.xlu0 %957
      %959 = vrot.lane.b32.xlu0 %v499, 32
      %v960 = vpop.permute.xlu0 %959
      %961 = vrot.lane.b32.xlu0 %v501, 32
      %v962 = vpop.permute.xlu0 %961
      %963 = vrot.lane.b32.xlu0 %v504, 32
      %v964 = vpop.permute.xlu0 %963
      %965 = vrot.lane.b32.xlu0 %v506, 32
      %v966 = vpop.permute.xlu0 %965
      %967 = vrot.lane.b32.xlu0 %v509, 32
      %v968 = vpop.permute.xlu0 %967
      %969 = vrot.lane.b32.xlu0 %v511, 32
      %v970 = vpop.permute.xlu0 %969
      %971 = vrot.lane.b32.xlu0 %v514, 32
      %v972 = vpop.permute.xlu0 %971
      %973 = vrot.lane.b32.xlu0 %v516, 32
      %v974 = vpop.permute.xlu0 %973
      %975 = vrot.lane.b32.xlu0 %v519, 32
      %v976 = vpop.permute.xlu0 %975
      %977 = vrot.lane.b32.xlu0 %v521, 32
      %v978 = vpop.permute.xlu0 %977
      %979 = vrot.lane.b32.xlu0 %v524, 32
      %v980 = vpop.permute.xlu0 %979
      %981 = vrot.lane.b32.xlu0 %v526, 32
      %v982 = vpop.permute.xlu0 %981
      %983 = vrot.lane.b32.xlu0 %v529, 32
      %v984 = vpop.permute.xlu0 %983
      %985 = vrot.lane.b32.xlu0 %v531, 32
      %v986 = vpop.permute.xlu0 %985
      %987 = vrot.lane.b32.xlu0 %v534, 32
      %v988 = vpop.permute.xlu0 %987
      %989 = vrot.lane.b32.xlu0 %v536, 32
      %v990 = vpop.permute.xlu0 %989
      %991 = vrot.lane.b32.xlu0 %v539, 32
      %v992 = vpop.permute.xlu0 %991
      %993 = vrot.lane.b32.xlu0 %v541, 32
      %v994 = vpop.permute.xlu0 %993
      %995 = vrot.lane.b32.xlu0 %v544, 32
      %v996 = vpop.permute.xlu0 %995
      %997 = vrot.lane.b32.xlu0 %v546, 32
      %v998 = vpop.permute.xlu0 %997
      %999 = vrot.lane.b32.xlu0 %v549, 32
      %v1000 = vpop.permute.xlu0 %999
      %1001 = vrot.lane.b32.xlu0 %v551, 32
      %v1002 = vpop.permute.xlu0 %1001
      %1003 = vrot.lane.b32.xlu0 %v554, 32
      %v1004 = vpop.permute.xlu0 %1003
      %1005 = vrot.lane.b32.xlu0 %v556, 32
      %v1006 = vpop.permute.xlu0 %1005
      %vm1039 = vcmask 261120
      %1040 = vst.msk [vmem:[%s293] sm:$0xff] %vm1039, %v944
      %1041 = vst.msk [vmem:[%s293 + $0x8] sm:$0xff] %vm1039, %v946
      %1042 = vst.msk [vmem:[%s293 + $0x10] sm:$0xff] %vm1039, %v948
      %1043 = vst.msk [vmem:[%s293 + $0x18] sm:$0xff] %vm1039, %v950
      %1044 = vst.msk [vmem:[%s293 + $0x20] sm:$0xff] %vm1039, %v952
      %1045 = vst.msk [vmem:[%s293 + $0x28] sm:$0xff] %vm1039, %v954
      %1046 = vst.msk [vmem:[%s293 + $0x30] sm:$0xff] %vm1039, %v956
      %1047 = vst.msk [vmem:[%s293 + $0x38] sm:$0xff] %vm1039, %v958
      %1048 = vst.msk [vmem:[%s293 + $0x40] sm:$0xff] %vm1039, %v960
      %1049 = vst.msk [vmem:[%s293 + $0x48] sm:$0xff] %vm1039, %v962
      %1050 = vst.msk [vmem:[%s293 + $0x50] sm:$0xff] %vm1039, %v964
      %1051 = vst.msk [vmem:[%s293 + $0x58] sm:$0xff] %vm1039, %v966
      %1052 = vst.msk [vmem:[%s293 + $0x60] sm:$0xff] %vm1039, %v968
      %1053 = vst.msk [vmem:[%s293 + $0x68] sm:$0xff] %vm1039, %v970
      %1054 = vst.msk [vmem:[%s293 + $0x70] sm:$0xff] %vm1039, %v972
      %1055 = vst.msk [vmem:[%s293 + $0x78] sm:$0xff] %vm1039, %v974
      %1056 = vst.msk [vmem:[%s293 + $0x80] sm:$0xff] %vm1039, %v976
      %1057 = vst.msk [vmem:[%s293 + $0x88] sm:$0xff] %vm1039, %v978
      %1058 = vst.msk [vmem:[%s293 + $0x90] sm:$0xff] %vm1039, %v980
      %1059 = vst.msk [vmem:[%s293 + $0x98] sm:$0xff] %vm1039, %v982
      %1060 = vst.msk [vmem:[%s293 + $0xa0] sm:$0xff] %vm1039, %v984
      %1061 = vst.msk [vmem:[%s293 + $0xa8] sm:$0xff] %vm1039, %v986
      %1062 = vst.msk [vmem:[%s293 + $0xb0] sm:$0xff] %vm1039, %v988
      %1063 = vst.msk [vmem:[%s293 + $0xb8] sm:$0xff] %vm1039, %v990
      %1064 = vst.msk [vmem:[%s293 + $0xc0] sm:$0xff] %vm1039, %v992
      %1065 = vst.msk [vmem:[%s293 + $0xc8] sm:$0xff] %vm1039, %v994
      %1066 = vst.msk [vmem:[%s293 + $0xd0] sm:$0xff] %vm1039, %v996
      %1067 = vst.msk [vmem:[%s293 + $0xd8] sm:$0xff] %vm1039, %v998
      %1068 = vst.msk [vmem:[%s293 + $0xe0] sm:$0xff] %vm1039, %v1000
      %1069 = vst.msk [vmem:[%s293 + $0xe8] sm:$0xff] %vm1039, %v1002
      %1070 = vst.msk [vmem:[%s293 + $0xf0] sm:$0xff] %vm1039, %v1004
      %1071 = vst.msk [vmem:[%s293 + $0xf8] sm:$0xff] %vm1039, %v1006
      %s1072 = smul.u32 32, %s18
      %p1073 = scmp.lt.s32.totalorder %s1072, 63
      %s1074 = scalar_select %p1073, %s1072, 63
      %s1075 = smul.addr %s1074, 4
      %s1076 = scalar_lea.vmem %s3, %s1075
      %s1077 = smul.u32 32, %s18
      %p1078 = scmp.lt.s32.totalorder %s1077, 63
      %s1079 = scalar_select %p1078, %s1077, 63
      %s1080 = smul.addr %s1079, 4
      %s1081 = scalar_lea.vmem %s4, %s1080
      %s1082 = smul.u32 32, %s18
      %p1083 = scmp.lt.s32.totalorder %s1082, 63
      %s1084 = scalar_select %p1083, %s1082, 63
      %s1085 = smul.addr %s1084, 4
      %s1086 = scalar_lea.vmem %s5, %s1085
      %s1087 = smul.u32 32, %s18
      %p1088 = scmp.lt.s32.totalorder %s1087, 63
      %s1089 = scalar_select %p1088, %s1087, 63
      %s1090 = smul.addr %s1089, 8
      %s1091 = scalar_lea.vmem %s6, %s1090
      // Predicated region
      $region33: #{tpu_custom_call.1} parent=31 // pred_check
        %p1092 = pneg %p104
      $region34: #{tpu_custom_call.1} parent=31 // pred_check_branch
        %1094 = sbr.rel (%p1092) target = $region36
      $region35: #{tpu_custom_call.1} parent=31 // pred_region
        %s1095 = smul.u32 32, %s18
      $region36: #{tpu_custom_call.1} parent=31 // pred_fallthru
        _
      // Predicated region
      $region37: #{tpu_custom_call.1} parent=31 // pred_check
        %p1096 = pneg %p130
      $region38: #{tpu_custom_call.1} parent=31 // pred_check_branch
        %1098 = sbr.rel (%p1096) target = $region40
      $region39: #{tpu_custom_call.1} parent=31 // pred_region
        %s1099 = smul.u32 32, %s18
      $region40: #{tpu_custom_call.1} parent=31 // pred_fallthru
        _
      // Predicated region
      $region41: #{tpu_custom_call.1} parent=31 // pred_check
        %p1100 = pneg %p156
      $region42: #{tpu_custom_call.1} parent=31 // pred_check_branch
        %1102 = sbr.rel (%p1100) target = $region44
      $region43: #{tpu_custom_call.1} parent=31 // pred_region
        %s1103 = smul.u32 32, %s18
      $region44: #{tpu_custom_call.1} parent=31 // pred_fallthru
        _
      // Predicated region
      $region45: #{tpu_custom_call.1} parent=31 // pred_check
        %p1104 = pneg %p182
      $region46: #{tpu_custom_call.1} parent=31 // pred_check_branch
        %1106 = sbr.rel (%p1104) target = $region48
      $region47: #{tpu_custom_call.1} parent=31 // pred_region
        %s1107 = smul.u32 32, %s18
      $region48: #{tpu_custom_call.1} parent=31 // pred_fallthru
        _
    $region32: #{tpu_custom_call.1} parent=5 // pred_fallthru
      _
    %p1108 = scmp.le.s32.totalorder 2, %s13
    // Predicated region
    $region49: #{tpu_custom_call.1} parent=5 // pred_check
      %p1109 = pneg %p1108
    $region50: #{tpu_custom_call.1} parent=5 // pred_check_branch
      %1111 = sbr.rel (%p1109) target = $region52
    $region51: #{tpu_custom_call.1} parent=5 // pred_region
      %s1112 = ssub.s32 %s13, 2
      // Predicated region
      $region53: #{tpu_custom_call.1} parent=51 // pred_check
        %p1113 = pneg %p110
      $region54: #{tpu_custom_call.1} parent=51 // pred_check_branch
        %1115 = sbr.rel (%p1113) target = $region56
      $region55: #{tpu_custom_call.1} parent=51 // pred_region
        %s1116 = smul.u32 32, %s19
        %p1117 = scmp.lt.s32.totalorder %s1116, 63
        %s1118 = scalar_select %p1117, %s1116, 63
        %s1119 = smul.addr %s1118, 4
        %s1120 = scalar_lea.vmem %s3, %s1119
      $region56: #{tpu_custom_call.1} parent=51 // pred_fallthru
        _
      // Predicated region
      $region57: #{tpu_custom_call.1} parent=51 // pred_check
        %p1121 = pneg %p136
      $region58: #{tpu_custom_call.1} parent=51 // pred_check_branch
        %1123 = sbr.rel (%p1121) target = $region60
      $region59: #{tpu_custom_call.1} parent=51 // pred_region
        %s1124 = smul.u32 32, %s19
        %p1125 = scmp.lt.s32.totalorder %s1124, 63
        %s1126 = scalar_select %p1125, %s1124, 63
        %s1127 = smul.addr %s1126, 4
        %s1128 = scalar_lea.vmem %s4, %s1127
      $region60: #{tpu_custom_call.1} parent=51 // pred_fallthru
        _
      // Predicated region
      $region61: #{tpu_custom_call.1} parent=51 // pred_check
        %p1129 = pneg %p162
      $region62: #{tpu_custom_call.1} parent=51 // pred_check_branch
        %1131 = sbr.rel (%p1129) target = $region64
      $region63: #{tpu_custom_call.1} parent=51 // pred_region
        %s1132 = smul.u32 32, %s19
        %p1133 = scmp.lt.s32.totalorder %s1132, 63
        %s1134 = scalar_select %p1133, %s1132, 63
        %s1135 = smul.addr %s1134, 4
        %s1136 = scalar_lea.vmem %s5, %s1135
      $region64: #{tpu_custom_call.1} parent=51 // pred_fallthru
        _
      // Predicated region
      $region65: #{tpu_custom_call.1} parent=51 // pred_check
        %p1137 = pneg %p188
      $region66: #{tpu_custom_call.1} parent=51 // pred_check_branch
        %1139 = sbr.rel (%p1137) target = $region68
      $region67: #{tpu_custom_call.1} parent=51 // pred_region
        %s1140 = smul.u32 32, %s19
        %p1141 = scmp.lt.s32.totalorder %s1140, 63
        %s1142 = scalar_select %p1141, %s1140, 63
        %s1143 = smul.addr %s1142, 8
        %s1144 = scalar_lea.vmem %s6, %s1143
      $region68: #{tpu_custom_call.1} parent=51 // pred_fallthru
        _
    $region52: #{tpu_custom_call.1} parent=5 // pred_fallthru
      _
  $region6: #{tpu_custom_call.1} parent=0 // loop_footer
    %s17 = sadd.s32 1, %s13
  $region7: #{tpu_custom_call.1} parent=0 // loop_footer_branch
    %12 = sbr.rel target = $region3
  $region8: #{tpu_custom_call.1} parent=0 // loop_exit
    _

</llo_original>
